<compile_context>
chip_gen: v7x
topology: tpu7x:2x2x1
jax: 0.10.0
libtpu: 0.0.40
codegen_flags: <defaults>
</compile_context>

<pallas_src>
import jax
import jax.numpy as jnp
from jax.experimental import pallas as pl
from jax.experimental.pallas import tpu as pltpu

LANES = 128


def _rezero_kernel(w_ref, x_ref, o_ref):
    # w_ref: SMEM scalar (1,) float32; x_ref / o_ref: VMEM tiles [tile_rows, W].
    x = x_ref[...]
    w = w_ref[0]
    if jnp.issubdtype(o_ref.dtype, jnp.floating):
        # Native-dtype multiply: avoids the f32 upcast (half the live vreg bytes)
        # on bf16-capable VPUs; compiler handles v5e transparently.
        o_ref[...] = x * w.astype(o_ref.dtype)
    else:
        o_ref[...] = (x.astype(jnp.float32) * w).astype(o_ref.dtype)


def _scale_ref(x, w_f32_scalar):
    """Tail / reference path mirroring the kernel's math exactly."""
    if jnp.issubdtype(x.dtype, jnp.floating):
        return x * w_f32_scalar.astype(x.dtype)
    return (x.astype(jnp.float32) * w_f32_scalar).astype(x.dtype)


def _chip_tuning():
    """Generation-dependent (block_bytes, vmem_limit_bytes).

    Bigger blocks amortize the ~0.35 us per-grid-step overhead; on v7x VMEM is
    only 64 MiB so block growth must stop earlier than on v5e/v6e (128 MiB).
    """
    vmem_bytes = None
    try:
        info = pltpu.get_tpu_info()
        vmem_bytes = getattr(info, "vmem_capacity_bytes", None)
    except Exception:
        vmem_bytes = None
    if vmem_bytes is None:
        # Unknown chip: conservative block / limit that fits every generation.
        return 4 * 1024 * 1024, 32 * 1024 * 1024
    if vmem_bytes >= 100 * 1024 * 1024:
        # v5e / v6e: 128 MiB VMEM.  4 buffers x 8 MiB = 32 MiB live.
        return 8 * 1024 * 1024, 64 * 1024 * 1024
    # v7x: 64 MiB VMEM.  4 buffers x 6 MiB = 24 MiB live, limit 40 MiB.
    return 6 * 1024 * 1024, 40 * 1024 * 1024


def rezero(x: jax.Array, resweight: jax.Array) -> jax.Array:
    """Elementwise x * resweight (scalar), exact ReZero.forward semantics."""
    orig_shape = x.shape
    orig_dtype = x.dtype
    n = x.size
    itemsize = jnp.dtype(orig_dtype).itemsize
    # Sub-32-bit dtypes pack along sublanes: f32 -> 8, bf16 -> 16, int8/fp8 -> 32.
    sublane_align = max(8, 32 // max(itemsize, 1))

    # Learnable scalar in SMEM as float32 (SMEM is 32-bit word storage).
    w_f32 = jnp.asarray(resweight, dtype=jnp.float32).reshape((1,))

    if n == 0:
        return jnp.reshape(x, orig_shape)

    flat = jnp.reshape(x, (-1,))
    n_main = (n // LANES) * LANES

    if n_main == 0:
        # Fewer than 128 elements: a kernel launch is pure overhead.
        return jnp.reshape(_scale_ref(flat, w_f32[0]), orig_shape)

    # Lane-dense width: largest multiple of 128 (<= 4096) dividing n_main.
    width = LANES
    for cand in (4096, 2048, 1024, 512, 256, 128):
        if n_main % cand == 0:
            width = cand
            break
    rows = n_main // width

    block_bytes, vmem_limit = _chip_tuning()
    rows_per_block = max(1, block_bytes // (width * itemsize))
    tile_rows = max(sublane_align, (rows_per_block // sublane_align) * sublane_align)
    tile_rows = min(tile_rows, rows)

    # If the whole input fits in one block, split it so v7x's two TensorCores
    # both engage under dimension_semantics=("parallel",).
    if rows > sublane_align and pl.cdiv(rows, tile_rows) < 2:
        half = pl.cdiv(rows, 2)
        tile_rows = max(
            sublane_align,
            ((half + sublane_align - 1) // sublane_align) * sublane_align,
        )

    grid = (pl.cdiv(rows, tile_rows),)

    x2d = jnp.reshape(flat[:n_main], (rows, width))

    cost = pl.CostEstimate(
        flops=n_main,
        transcendentals=0,
        bytes_accessed=2 * n_main * itemsize,
    )

    out2d = pl.pallas_call(
        _rezero_kernel,
        out_shape=jax.ShapeDtypeStruct((rows, width), orig_dtype),
        grid_spec=pltpu.PrefetchScalarGridSpec(
            num_scalar_prefetch=0,
            grid=grid,
            in_specs=[
                pl.BlockSpec(memory_space=pltpu.SMEM),                # resweight
                pl.BlockSpec((tile_rows, width), lambda i: (i, 0)),   # input tile
            ],
            out_specs=pl.BlockSpec((tile_rows, width), lambda i: (i, 0)),
        ),
        compiler_params=pltpu.CompilerParams(
            dimension_semantics=("parallel",),
            vmem_limit_bytes=vmem_limit,
        ),
        cost_estimate=cost,
    )(w_f32, x2d)

    out_main = jnp.reshape(out2d, (-1,))
    if n_main == n:
        return jnp.reshape(out_main, orig_shape)
    # <128-element tail handled with plain jnp (no full-array pad + slice).
    tail = _scale_ref(flat[n_main:], w_f32[0])
    return jnp.reshape(jnp.concatenate([out_main, tail]), orig_shape)


if __name__ == "__main__":
    key = jax.random.PRNGKey(0)
    x = jax.random.normal(key, (2, 4, 16, 16), dtype=jnp.float32)

    # Deterministic parameter init, matching nn.Parameter(torch.Tensor([0.0]))
    resweight = jnp.array([0.0], dtype=jnp.float32)

    out = rezero(x, resweight)
    jax.block_until_ready(out)

    # Reference check: torch.mul(input, resweight) with resweight == 0.0
    ref = x * resweight[0]
    assert out.shape == x.shape and out.dtype == x.dtype
    assert jnp.allclose(out, ref, atol=0.0, rtol=0.0)

    # Non-zero scale to make sure the kernel really multiplies.
    rw2 = jnp.array([0.37], dtype=jnp.float32)
    out2 = rezero(x, rw2)
    jax.block_until_ready(out2)
    assert jnp.allclose(out2, x * rw2[0], atol=1e-6, rtol=1e-6)

    # Shape whose row count is not block-aligned (exercises edge-block masking
    # and the >=2-block megacore split).
    x3 = jax.random.normal(jax.random.PRNGKey(1), (3, 5, 24, 128), dtype=jnp.float32)
    out3 = rezero(x3, rw2)
    jax.block_until_ready(out3)
    assert jnp.allclose(out3, x3 * rw2[0], atol=1e-6, rtol=1e-6)

    # Size not a multiple of 128 (exercises the prefix-kernel + jnp-tail path).
    x4 = jax.random.normal(jax.random.PRNGKey(2), (7, 37), dtype=jnp.float32)
    out4 = rezero(x4, rw2)
    jax.block_until_ready(out4)
    assert out4.shape == x4.shape and out4.dtype == x4.dtype
    assert jnp.allclose(out4, x4 * rw2[0], atol=1e-6, rtol=1e-6)

    # bf16 input (exercises the native-dtype multiply path).
    x5 = jax.random.normal(jax.random.PRNGKey(3), (2, 8, 128)).astype(jnp.bfloat16)
    out5 = rezero(x5, rw2)
    jax.block_until_ready(out5)
    assert out5.dtype == jnp.bfloat16
    assert jnp.allclose(out5.astype(jnp.float32),
                        _scale_ref(x5, rw2[0]).astype(jnp.float32),
                        atol=0.0, rtol=0.0)

    print("KERNEL_OK")
</pallas_src>

<mosaic_0001>
module attributes {stable_mosaic.version = 11 : i64} {
  func.func @_rezero_kernel(%arg0: i32, %arg1: memref<1xf32, #tpu.memory_space<smem>>, %arg2: memref<1x2048xf32, #tpu.memory_space<vmem>>, %arg3: memref<1x2048xf32, #tpu.memory_space<vmem>>) attributes {dimension_semantics = [#tpu.dimension_semantics<parallel>], iteration_bounds = array<i64: 1>, scalar_prefetch = 0 : i64, scratch_operands = 0 : i64, tpu.core_type = #tpu.core_type<tc>, window_params = [{transform_indices = @transform_0, window_bounds = array<i64: 1>}, {transform_indices = @transform_1, window_bounds = array<i64: 1, 2048>}, {transform_indices = @transform_2, window_bounds = array<i64: 1, 2048>}]} {
    %c0 = arith.constant 0 : index
    %c0_0 = arith.constant 0 : index
    %0 = vector.load %arg2[%c0, %c0_0] : memref<1x2048xf32, #tpu.memory_space<vmem>>, vector<1x2048xf32>
    %c0_1 = arith.constant 0 : index
    %1 = memref.load %arg1[%c0_1] : memref<1xf32, #tpu.memory_space<smem>>
    %2 = vector.broadcast %1 : f32 to vector<1x2048xf32>
    %3 = arith.mulf %0, %2 : vector<1x2048xf32>
    %c0_2 = arith.constant 0 : index
    %c0_3 = arith.constant 0 : index
    %4 = vector.load %arg3[%c0_2, %c0_3] : memref<1x2048xf32, #tpu.memory_space<vmem>>, vector<1x2048xf32>
    tpu.vector_store %arg3[%c0_2, %c0_3], %3 {strides = array<i32>} : memref<1x2048xf32, #tpu.memory_space<vmem>>, vector<1x2048xf32>,
    return
  }
  func.func @transform_0(%arg0: i32) -> i32 {
    %c0_i32 = arith.constant 0 : i32
    %c0_i32_0 = arith.constant 0 : i32
    return %c0_i32 : i32
  }
  func.func @transform_1(%arg0: i32) -> (i32, i32) {
    %c0_i32 = arith.constant 0 : i32
    %c0_i32_0 = arith.constant 0 : i32
    return %arg0, %c0_i32 : i32, i32
  }
  func.func @transform_2(%arg0: i32) -> (i32, i32) {
    %c0_i32 = arith.constant 0 : i32
    %c0_i32_0 = arith.constant 0 : i32
    return %arg0, %c0_i32 : i32, i32
  }
}

</mosaic_0001>

<llo_original>
// kernel: tpu_custom_call.1
$region0: #{tpu_custom_call.1}
  #allocation0 [shape = 'u32[]', space=smem, size = 0x4, offset = 0x4, fixed_abs, tag = 'smem constant byte address 0x4 - core index']
  #allocation1 [shape = 'u32[144,128]{1,0:T(1,128)}', space=vmem, size = 0x12000, scoped, tag = 'internal scratch']
  #allocation2 [shape = 'f32[1]{0:T(128)S(6)}', space=smem, size = 0x200, scoped, tag = 'scoped memory for tpu_custom_call.1']
  %s0 = inlined_call_operand.<no memory space> [shape: f32[1], index: 0, kind: input, shape index: {}]
  %s1 = inlined_call_operand.hbm [shape: f32[1,2048], index: 1, kind: input, shape index: {}]
  %s2 = inlined_call_operand.hbm [shape: f32[1,2048], index: 2, kind: output, shape index: {}]
  %s3 = sld [smem:[#allocation0]]
  $region22: #{tpu_custom_call.1} parent=0
    _
  %s5 = ssub.s32 1, %s3
  %s6 = scalar_select 0, %s5, %s3
  %7 = sst [smem:[#allocation2]] %s0
  $region1: #{tpu_custom_call.1} parent=0
    #allocation3 [shape = 'u8[8192]{0}', space=vmem, size = 0x2000, scoped, tag = 'input window, operand 1, single buffered']
    #allocation4 [shape = 's32[1]{0}', space=sflag, size = 0x4, scoped, tag = 'scoped memory for tpu_custom_call.1']
    #allocation5 [shape = 's32[1]{0}', space=sflag, size = 0x4, scoped, tag = 'scoped memory for tpu_custom_call.1']
    #allocation6 [shape = 'u8[8192]{0}', space=vmem, size = 0x2000, scoped, tag = 'output window, operand 0, single buffered']
    %8 = vsyncpa [#allocation4], 0
    %9 = vsyncpa [#allocation5], 0
    // Predicated region
    $region2: #{tpu_custom_call.1} parent=1 // pred_check
      _
    $region3: #{tpu_custom_call.1} parent=1 // pred_check_branch
      %11 = sbr.rel (0) target = $region5
    $region4: #{tpu_custom_call.1} parent=1 // pred_region
      _
    $region5: #{tpu_custom_call.1} parent=1 // pred_fallthru
      _
    // Predicated region
    $region6: #{tpu_custom_call.1} parent=1 // pred_check
      _
    $region7: #{tpu_custom_call.1} parent=1 // pred_check_branch
      %13 = sbr.rel (0) target = $region9
    $region8: #{tpu_custom_call.1} parent=1 // pred_region
      %s15 = ssub.s32 256, 256
      %16 = vsyncadd [#allocation4], %s15
      %s18 = sshll.u32 [#allocation3], 4
      %s19 = int_to_ptr.vmem [resolvable:$true] %s18
      %21 = dma.hbm_to_vmem [thread:$0]  %s1, 256, %s19, [#allocation4]
    $region9: #{tpu_custom_call.1} parent=1 // pred_fallthru
      _
    // Predicated region
    $region10: #{tpu_custom_call.1} parent=1 // pred_check
      _
    $region11: #{tpu_custom_call.1} parent=1 // pred_check_branch
      %23 = sbr.rel (0) target = $region13
    $region12: #{tpu_custom_call.1} parent=1 // pred_region
      %24 = dma.done [#allocation4], 256
    $region13: #{tpu_custom_call.1} parent=1 // pred_fallthru
      _
    %v25 = vld [vmem:[#allocation3] sm:$0xff]
    %v26 = vld [vmem:[#allocation3 + $0x8] sm:$0xff]
    %s27 = sld [smem:[#allocation2]]
    %v28 = vstv %s27
    %v29 = vmul.f32 %v25, %v28
    %v30 = vmul.f32 %v26, %v28
    %31 = vst [vmem:[#allocation6] sm:$0xff] %v29
    %32 = vst [vmem:[#allocation6 + $0x8] sm:$0xff] %v30
    // Predicated region
    $region14: #{tpu_custom_call.1} parent=1 // pred_check
      _
    $region15: #{tpu_custom_call.1} parent=1 // pred_check_branch
      %34 = sbr.rel (0) target = $region17
    $region16: #{tpu_custom_call.1} parent=1 // pred_region
      %s36 = ssub.s32 256, 256
      %37 = vsyncadd [#allocation5], %s36
      %s39 = sshll.u32 [#allocation6], 4
      %s40 = int_to_ptr.vmem [resolvable:$true] %s39
      %42 = dma.vmem_to_hbm [thread:$0]  %s40, 256, %s2, [#allocation5]
    $region17: #{tpu_custom_call.1} parent=1 // pred_fallthru
      _
    // Predicated region
    $region18: #{tpu_custom_call.1} parent=1 // pred_check
      _
    $region19: #{tpu_custom_call.1} parent=1 // pred_check_branch
      %44 = sbr.rel (0) target = $region21
    $region20: #{tpu_custom_call.1} parent=1 // pred_region
      %45 = dma.done [#allocation5], 256
    $region21: #{tpu_custom_call.1} parent=1 // pred_fallthru
      _
    %46 = vsyncpa [#allocation4], 1
    %47 = vsyncpa [#allocation5], 1

</llo_original>
